<compile_context>
chip_gen: v5e
topology: v5e:2x2
jax: 0.10.0
libtpu: 0.0.40
codegen_flags: <defaults>
</compile_context>

<pallas_src>
import functools

import jax
import jax.numpy as jnp
from jax.experimental import pallas as pl
from jax.experimental.pallas import tpu as pltpu

_LANE = 128  # lane width: last dims padded to multiples of this (lane-dense tiles)


def _round_up(x, m):
    return ((x + m - 1) // m) * m


# ----------------------------------------------------------------------------
# Hardware queries (done once at import; guarded so failures fall back safely).
# ----------------------------------------------------------------------------
def _query_vmem_budget():
    try:
        cap = int(pltpu.get_tpu_info().vmem_capacity_bytes)
    except Exception:
        cap = 64 * 1024 * 1024  # conservative (v7x-sized) fallback
    # Leave headroom below physical VMEM for Mosaic internal scratch.
    return max(32 * 1024 * 1024, min(int(cap * 0.82), cap - 8 * 1024 * 1024))


def _query_bf16_epilogue_ok():
    # bf16 VPU/EUP exists on v6e / v7x; keep the f32 epilogue elsewhere (v5e...).
    try:
        kind = jax.devices()[0].device_kind.lower()
    except Exception:
        return False
    return ("v6" in kind) or ("v7" in kind)


_VMEM_BUDGET = _query_vmem_budget()
_BF16_EPILOGUE = _query_bf16_epilogue_ok()


# ----------------------------------------------------------------------------
# Kernel
# ----------------------------------------------------------------------------
def fcnn_kernel(x_ref, w1_ref, b1_ref, w2_ref, b2_ref, w3_ref, b3_ref, o_ref,
                *, epilogue_dtype):
    """Fused 3-layer MLP on one batch tile, entirely in VMEM.

    MXU operands stay in their storage dtype (bf16 by default), accumulation is
    f32 via preferred_element_type, bias-add + tanh run in `epilogue_dtype`
    (bf16 on v6e/v7x, f32 elsewhere), and the final result is written in the
    output ref's dtype (the caller's original x dtype).
    """
    cdt = x_ref.dtype

    def act(acc_f32, b_ref):
        a = acc_f32.astype(epilogue_dtype) + b_ref[...].astype(epilogue_dtype)
        return jnp.tanh(a).astype(cdt)

    h = jnp.dot(x_ref[...], w1_ref[...], preferred_element_type=jnp.float32)
    h = act(h, b1_ref)
    h = jnp.dot(h, w2_ref[...], preferred_element_type=jnp.float32)
    h = act(h, b2_ref)
    out = jnp.dot(h, w3_ref[...], preferred_element_type=jnp.float32)
    out = out + b3_ref[...].astype(jnp.float32)
    o_ref[...] = out.astype(o_ref.dtype)


# ----------------------------------------------------------------------------
# Parameter preparation (hoisted out of the per-call path)
# ----------------------------------------------------------------------------
def prepare_fcnn_params(params, compute_dtype=jnp.bfloat16):
    """Pad feature dims to lane (128) multiples and cast weights ONCE.

    Returns (padded_arrays, out_dim).  Padding with zeros is exact: padded
    hidden columns stay 0 through tanh because both the weight columns and the
    bias entries are zero.  Biases are kept in f32 (they are added on the
    accumulator inside the kernel).
    """
    w1, b1, w2, b2, w3, b3 = params
    in_dim, hidden_dim = w1.shape
    out_dim = w3.shape[1]

    kp = _round_up(in_dim, _LANE)
    hp = _round_up(hidden_dim, _LANE)
    np_ = _round_up(out_dim, _LANE)

    wdt = jnp.dtype(compute_dtype) if compute_dtype is not None else w1.dtype

    def pad_w(w, rows, cols):
        if w.shape != (rows, cols):
            w = jnp.pad(w, ((0, rows - w.shape[0]), (0, cols - w.shape[1])))
        return w.astype(wdt)

    def pad_b(b, cols):
        b = b.reshape(1, -1)
        if b.shape[1] != cols:
            b = jnp.pad(b, ((0, 0), (0, cols - b.shape[1])))
        return b.astype(jnp.float32)

    arrays = (
        pad_w(w1, kp, hp), pad_b(b1, hp),
        pad_w(w2, hp, hp), pad_b(b2, hp),
        pad_w(w3, hp, np_), pad_b(b3, np_),
    )
    return arrays, out_dim


# ----------------------------------------------------------------------------
# Forward
# ----------------------------------------------------------------------------
def _resident_spec(shape):
    """Constant-index-map spec (data stays VMEM-resident across grid steps).

    Single-buffered when supported: there is no next DMA to hide, and this
    halves the weights' VMEM footprint (matters on v7x's 64 MiB VMEM)."""
    index_map = lambda i: (0,) * len(shape)
    try:
        return pl.BlockSpec(shape, index_map, pipeline_mode=pl.Buffered(1))
    except (TypeError, ValueError):
        return pl.BlockSpec(shape, index_map)


@functools.partial(jax.jit, static_argnames=("out_dim", "block_b"))
def fcnn_forward_prepared(x, prepared_arrays, out_dim, block_b=512):
    """Pallas FCNN forward on pre-padded/pre-cast params.

    x: (B, in_dim).  Returns (B, out_dim) in x's original dtype."""
    w1p, b1p, w2p, b2p, w3p, b3p = prepared_arrays
    B, in_dim = x.shape
    kp, hp = w1p.shape
    np_ = w3p.shape[1]
    out_dtype = x.dtype

    # MXU operands take the prepared weights' dtype (bf16 by default).
    cdt = w1p.dtype
    if x.dtype != cdt:
        x = x.astype(cdt)

    # Only feature-dim padding of x (exact); batch edge handled by Pallas masking.
    if kp != in_dim:
        x = jnp.pad(x, ((0, 0), (0, kp - in_dim)))

    # ---- batch tiling ----
    itemsize = jnp.dtype(cdt).itemsize
    align = max(8, 32 // itemsize)               # sublane pack: 8 (f32) / 16 (bf16)
    block_b = max(align, _round_up(block_b, align))
    block_b = min(block_b, _round_up(B, align))  # don't compute pure padding
    steps = pl.cdiv(B, block_b)
    if steps % 2 == 1:
        # Prefer an even step count so v7x's 2 TensorCores both get work on the
        # ("parallel",) axis; keep tiles >= 128 rows so the MXU stays fed.
        half = _round_up(pl.cdiv(B, 2 * steps), align)
        if half >= 128 and pl.cdiv(B, half) % 2 == 0:
            block_b = half
            steps = pl.cdiv(B, block_b)
    grid = (steps,)

    # ---- epilogue dtype (bias-add + tanh) ----
    epilogue_dtype = jnp.bfloat16 if (_BF16_EPILOGUE and cdt == jnp.bfloat16) else jnp.float32

    # ---- VMEM budget estimate ----
    wb = jnp.dtype(w1p.dtype).itemsize
    ob = jnp.dtype(out_dtype).itemsize
    est = (
        2 * block_b * kp * itemsize              # x tiles (double-buffered)
        + 2 * block_b * np_ * ob                 # out tiles (double-buffered)
        + (kp * hp + hp * hp + hp * np_) * wb    # weights (single-buffered, resident)
        + (2 * hp + np_) * 8 * 4                 # f32 biases (sublane-padded)
        + 2 * block_b * hp * (4 + itemsize)      # h1/h2: f32 accumulators + cdt copies
        + block_b * np_ * 4                      # final f32 accumulator
    )
    vmem_limit = int(min(max(int(1.5 * est), 32 * 1024 * 1024), _VMEM_BUDGET))

    out = pl.pallas_call(
        functools.partial(fcnn_kernel, epilogue_dtype=epilogue_dtype),
        out_shape=jax.ShapeDtypeStruct((B, np_), out_dtype),
        grid_spec=pltpu.PrefetchScalarGridSpec(
            num_scalar_prefetch=0,
            grid=grid,
            in_specs=[
                pl.BlockSpec((block_b, kp), lambda i: (i, 0)),  # x batch tile
                _resident_spec((kp, hp)),                        # w1
                _resident_spec((1, hp)),                         # b1
                _resident_spec((hp, hp)),                        # w2
                _resident_spec((1, hp)),                         # b2
                _resident_spec((hp, np_)),                       # w3
                _resident_spec((1, np_)),                        # b3
            ],
            out_specs=pl.BlockSpec((block_b, np_), lambda i: (i, 0)),
        ),
        compiler_params=pltpu.CompilerParams(
            dimension_semantics=("parallel",),   # shard batch grid across TCs (v7x)
            vmem_limit_bytes=vmem_limit,
        ),
    )(x, w1p, b1p, w2p, b2p, w3p, b3p)

    return out if np_ == out_dim else out[:, :out_dim]


def fcnn_forward(x, params, block_b=512, compute_dtype=jnp.bfloat16):
    """Convenience wrapper (pads/casts params on every call).
    Prefer prepare_fcnn_params() + fcnn_forward_prepared() to hoist that cost."""
    arrays, out_dim = prepare_fcnn_params(params, compute_dtype)
    return fcnn_forward_prepared(x, arrays, out_dim, block_b=block_b)


# ----------------------------------------------------------------------------
# Init + reference (mirrors torch.nn.Linear)
# ----------------------------------------------------------------------------
def init_fcnn_params(key, in_dim, out_dim, hidden_dim, dtype=jnp.float32):
    """Deterministic init mirroring nn.Linear's U(-1/sqrt(fan_in), 1/sqrt(fan_in)).
    Weights stored as (in, out) = PyTorch W.T."""
    ks = jax.random.split(key, 6)

    def linear(kw, kb, fan_in, fan_out):
        bound = 1.0 / jnp.sqrt(fan_in)
        w = jax.random.uniform(kw, (fan_in, fan_out), dtype, -bound, bound)
        b = jax.random.uniform(kb, (1, fan_out), dtype, -bound, bound)
        return w, b

    w1, b1 = linear(ks[0], ks[1], in_dim, hidden_dim)
    w2, b2 = linear(ks[2], ks[3], hidden_dim, hidden_dim)
    w3, b3 = linear(ks[4], ks[5], hidden_dim, out_dim)
    return (w1, b1, w2, b2, w3, b3)


def fcnn_reference(x, params):
    w1, b1, w2, b2, w3, b3 = params
    h1 = jnp.tanh(x @ w1 + b1)
    h2 = jnp.tanh(h1 @ w2 + b2)
    return h2 @ w3 + b3


if __name__ == "__main__":
    key = jax.random.PRNGKey(0)
    k_x, k_p, k_x2 = jax.random.split(key, 3)

    in_dim, out_dim, hidden_dim = 4, 4, 32
    params = init_fcnn_params(k_p, in_dim, out_dim, hidden_dim)

    # 1) Small batch, explicit f32 compute — exact semantics of the PyTorch module.
    prep_f32, od = prepare_fcnn_params(params, compute_dtype=jnp.float32)
    x = jax.random.normal(k_x, (8, in_dim), jnp.float32)
    out = jax.block_until_ready(fcnn_forward_prepared(x, prep_f32, od))
    ref = fcnn_reference(x, params)
    assert out.shape == (8, out_dim)
    assert out.dtype == x.dtype
    assert jnp.allclose(out, ref, atol=1e-4, rtol=1e-4), "f32 path mismatch"

    # 2) Non-divisible batch + multi-step parallel grid + default bf16 MXU operands.
    prep_bf16, od2 = prepare_fcnn_params(params)  # default compute_dtype=bf16
    x2 = jax.random.normal(k_x2, (389, in_dim), jnp.float32)
    out2 = jax.block_until_ready(fcnn_forward_prepared(x2, prep_bf16, od2))
    ref2 = fcnn_reference(x2, params)
    assert out2.shape == (389, out_dim)
    assert out2.dtype == x2.dtype  # result returned in x's original dtype
    assert jnp.allclose(out2, ref2, atol=1e-1, rtol=1e-1), "bf16 path mismatch"

    print("KERNEL_OK")
</pallas_src>

<mosaic_0001>
module attributes {stable_mosaic.version = 11 : i64} {
  func.func @fcnn_kernel(%arg0: i32, %arg1: memref<8x128xf32, #tpu.memory_space<vmem>>, %arg2: memref<128x128xf32, #tpu.memory_space<vmem>>, %arg3: memref<1x128xf32, #tpu.memory_space<vmem>>, %arg4: memref<128x128xf32, #tpu.memory_space<vmem>>, %arg5: memref<1x128xf32, #tpu.memory_space<vmem>>, %arg6: memref<128x128xf32, #tpu.memory_space<vmem>>, %arg7: memref<1x128xf32, #tpu.memory_space<vmem>>, %arg8: memref<8x128xf32, #tpu.memory_space<vmem>>) attributes {dimension_semantics = [#tpu.dimension_semantics<parallel>], iteration_bounds = array<i64: 1>, scalar_prefetch = 0 : i64, scratch_operands = 0 : i64, tpu.core_type = #tpu.core_type<tc>, window_params = [{transform_indices = @transform_0, window_bounds = array<i64: 8, 128>}, {pipeline_mode = #tpu.pipeline_mode<synchronous>, transform_indices = @transform_1, window_bounds = array<i64: 128, 128>}, {pipeline_mode = #tpu.pipeline_mode<synchronous>, transform_indices = @transform_2, window_bounds = array<i64: 1, 128>}, {pipeline_mode = #tpu.pipeline_mode<synchronous>, transform_indices = @transform_3, window_bounds = array<i64: 128, 128>}, {pipeline_mode = #tpu.pipeline_mode<synchronous>, transform_indices = @transform_4, window_bounds = array<i64: 1, 128>}, {pipeline_mode = #tpu.pipeline_mode<synchronous>, transform_indices = @transform_5, window_bounds = array<i64: 128, 128>}, {pipeline_mode = #tpu.pipeline_mode<synchronous>, transform_indices = @transform_6, window_bounds = array<i64: 1, 128>}, {transform_indices = @transform_7, window_bounds = array<i64: 8, 128>}]} {
    %c0 = arith.constant 0 : index
    %c0_0 = arith.constant 0 : index
    %0 = vector.load %arg1[%c0, %c0_0] : memref<8x128xf32, #tpu.memory_space<vmem>>, vector<8x128xf32>
    %c0_1 = arith.constant 0 : index
    %c0_2 = arith.constant 0 : index
    %1 = vector.load %arg2[%c0_1, %c0_2] : memref<128x128xf32, #tpu.memory_space<vmem>>, vector<128x128xf32>
    %cst = arith.constant dense<0.000000e+00> : vector<8x128xf32>
    %2 = tpu.matmul %0, %1, %cst {dimension_numbers = #tpu.dot_dimension_numbers<[1], [0], [0], [1], [0, 0, 1, 1], [], []>} : vector<8x128xf32>, vector<128x128xf32>, vector<8x128xf32> -> vector<8x128xf32>
    %c0_3 = arith.constant 0 : index
    %c0_4 = arith.constant 0 : index
    %3 = vector.load %arg3[%c0_3, %c0_4] : memref<1x128xf32, #tpu.memory_space<vmem>>, vector<1x128xf32>
    %4 = vector.broadcast %3 : vector<1x128xf32> to vector<8x128xf32>
    %5 = arith.addf %2, %4 : vector<8x128xf32>
    %6 = math.tanh %5 : vector<8x128xf32>
    %c0_5 = arith.constant 0 : index
    %c0_6 = arith.constant 0 : index
    %7 = vector.load %arg4[%c0_5, %c0_6] : memref<128x128xf32, #tpu.memory_space<vmem>>, vector<128x128xf32>
    %cst_7 = arith.constant dense<0.000000e+00> : vector<8x128xf32>
    %8 = tpu.matmul %6, %7, %cst_7 {dimension_numbers = #tpu.dot_dimension_numbers<[1], [0], [0], [1], [0, 0, 1, 1], [], []>} : vector<8x128xf32>, vector<128x128xf32>, vector<8x128xf32> -> vector<8x128xf32>
    %c0_8 = arith.constant 0 : index
    %c0_9 = arith.constant 0 : index
    %9 = vector.load %arg5[%c0_8, %c0_9] : memref<1x128xf32, #tpu.memory_space<vmem>>, vector<1x128xf32>
    %10 = vector.broadcast %9 : vector<1x128xf32> to vector<8x128xf32>
    %11 = arith.addf %8, %10 : vector<8x128xf32>
    %12 = math.tanh %11 : vector<8x128xf32>
    %c0_10 = arith.constant 0 : index
    %c0_11 = arith.constant 0 : index
    %13 = vector.load %arg6[%c0_10, %c0_11] : memref<128x128xf32, #tpu.memory_space<vmem>>, vector<128x128xf32>
    %cst_12 = arith.constant dense<0.000000e+00> : vector<8x128xf32>
    %14 = tpu.matmul %12, %13, %cst_12 {dimension_numbers = #tpu.dot_dimension_numbers<[1], [0], [0], [1], [0, 0, 1, 1], [], []>} : vector<8x128xf32>, vector<128x128xf32>, vector<8x128xf32> -> vector<8x128xf32>
    %c0_13 = arith.constant 0 : index
    %c0_14 = arith.constant 0 : index
    %15 = vector.load %arg7[%c0_13, %c0_14] : memref<1x128xf32, #tpu.memory_space<vmem>>, vector<1x128xf32>
    %16 = vector.broadcast %15 : vector<1x128xf32> to vector<8x128xf32>
    %17 = arith.addf %14, %16 : vector<8x128xf32>
    %c0_15 = arith.constant 0 : index
    %c0_16 = arith.constant 0 : index
    %18 = vector.load %arg8[%c0_15, %c0_16] : memref<8x128xf32, #tpu.memory_space<vmem>>, vector<8x128xf32>
    tpu.vector_store %arg8[%c0_15, %c0_16], %17 {strides = array<i32>} : memref<8x128xf32, #tpu.memory_space<vmem>>, vector<8x128xf32>,
    return
  }
  func.func @transform_0(%arg0: i32) -> (i32, i32) {
    %c0_i32 = arith.constant 0 : i32
    %c0_i32_0 = arith.constant 0 : i32
    return %arg0, %c0_i32 : i32, i32
  }
  func.func @transform_1(%arg0: i32) -> (i32, i32) {
    %c0_i32 = arith.constant 0 : i32
    %c0_i32_0 = arith.constant 0 : i32
    %c0_i32_1 = arith.constant 0 : i32
    return %c0_i32, %c0_i32_0 : i32, i32
  }
  func.func @transform_2(%arg0: i32) -> (i32, i32) {
    %c0_i32 = arith.constant 0 : i32
    %c0_i32_0 = arith.constant 0 : i32
    %c0_i32_1 = arith.constant 0 : i32
    return %c0_i32, %c0_i32_0 : i32, i32
  }
  func.func @transform_3(%arg0: i32) -> (i32, i32) {
    %c0_i32 = arith.constant 0 : i32
    %c0_i32_0 = arith.constant 0 : i32
    %c0_i32_1 = arith.constant 0 : i32
    return %c0_i32, %c0_i32_0 : i32, i32
  }
  func.func @transform_4(%arg0: i32) -> (i32, i32) {
    %c0_i32 = arith.constant 0 : i32
    %c0_i32_0 = arith.constant 0 : i32
    %c0_i32_1 = arith.constant 0 : i32
    return %c0_i32, %c0_i32_0 : i32, i32
  }
  func.func @transform_5(%arg0: i32) -> (i32, i32) {
    %c0_i32 = arith.constant 0 : i32
    %c0_i32_0 = arith.constant 0 : i32
    %c0_i32_1 = arith.constant 0 : i32
    return %c0_i32, %c0_i32_0 : i32, i32
  }
  func.func @transform_6(%arg0: i32) -> (i32, i32) {
    %c0_i32 = arith.constant 0 : i32
    %c0_i32_0 = arith.constant 0 : i32
    %c0_i32_1 = arith.constant 0 : i32
    return %c0_i32, %c0_i32_0 : i32, i32
  }
  func.func @transform_7(%arg0: i32) -> (i32, i32) {
    %c0_i32 = arith.constant 0 : i32
    %c0_i32_0 = arith.constant 0 : i32
    return %arg0, %c0_i32 : i32, i32
  }
}

</mosaic_0001>

<llo_original>
// kernel: fcnn_forward_prepared.1
$region0: #{fcnn_forward_prepared.1}
  #allocation0 [shape = 'u32[]', space=smem, size = 0x4, offset = 0x4, fixed_abs, tag = 'smem constant byte address 0x4 - core index']
  #allocation1 [shape = 'u32[72,128]{1,0:T(1,128)}', space=vmem, size = 0x9000, scoped, tag = 'internal scratch']
  %s0 = inlined_call_operand.vmem [shape: f32[8,128], index: 0, kind: input, shape index: {}]
  %s1 = inlined_call_operand.hbm [shape: f32[128,128], index: 1, kind: input, shape index: {}]
  %s2 = inlined_call_operand.vmem [shape: f32[1,128], index: 2, kind: input, shape index: {}]
  %s3 = inlined_call_operand.hbm [shape: f32[128,128], index: 3, kind: input, shape index: {}]
  %s4 = inlined_call_operand.vmem [shape: f32[1,128], index: 4, kind: input, shape index: {}]
  %s5 = inlined_call_operand.hbm [shape: f32[128,128], index: 5, kind: input, shape index: {}]
  %s6 = inlined_call_operand.vmem [shape: f32[1,128], index: 6, kind: input, shape index: {}]
  %s7 = inlined_call_operand.vmem [shape: f32[8,128], index: 7, kind: output, shape index: {}]
  %s8 = sld [smem:[#allocation0]]
  $region50: #{fcnn_forward_prepared.1} parent=0
    _
  %s10 = ssub.s32 1, %s8
  %s11 = scalar_select 0, %s10, %s8
  $region1: #{fcnn_forward_prepared.1} parent=0
    #allocation2 [shape = 'u8[65536]{0}', space=vmem, size = 0x10000, scoped, tag = 'input window, operand 1, single buffered']
    #allocation3 [shape = 's32[1]{0}', space=sflag, size = 0x4, scoped, tag = 'scoped memory for fcnn_forward_prepared.1']
    #allocation4 [shape = 'u8[65536]{0}', space=vmem, size = 0x10000, scoped, tag = 'input window, operand 3, single buffered']
    #allocation5 [shape = 's32[1]{0}', space=sflag, size = 0x4, scoped, tag = 'scoped memory for fcnn_forward_prepared.1']
    #allocation6 [shape = 'u8[65536]{0}', space=vmem, size = 0x10000, scoped, tag = 'input window, operand 5, single buffered']
    %12 = vsyncpa [#allocation3], 0
    %13 = vsyncpa [#allocation5], 0
    // Predicated region
    $region2: #{fcnn_forward_prepared.1} parent=1 // pred_check
      _
    $region3: #{fcnn_forward_prepared.1} parent=1 // pred_check_branch
      %15 = sbr.rel (0) target = $region5
    $region4: #{fcnn_forward_prepared.1} parent=1 // pred_region
      _
    $region5: #{fcnn_forward_prepared.1} parent=1 // pred_fallthru
      _
    // Predicated region
    $region6: #{fcnn_forward_prepared.1} parent=1 // pred_check
      _
    $region7: #{fcnn_forward_prepared.1} parent=1 // pred_check_branch
      %17 = sbr.rel (0) target = $region9
    $region8: #{fcnn_forward_prepared.1} parent=1 // pred_region
      %19 = vsyncadd [#allocation3], 0
      %s20 = sshll.u32 %s1, 4
      %s21 = int_to_ptr.hbm [resolvable:$true] %s20
      %s22 = sshll.u32 [#allocation2], 4
      %s23 = int_to_ptr.vmem [resolvable:$true] %s22
      %28 = dma.hbm_to_vmem [thread:$0]  %s21, 2048, %s23, [#allocation3], 128, 128, 8
    $region9: #{fcnn_forward_prepared.1} parent=1 // pred_fallthru
      _
    // Predicated region
    $region10: #{fcnn_forward_prepared.1} parent=1 // pred_check
      _
    $region11: #{fcnn_forward_prepared.1} parent=1 // pred_check_branch
      %30 = sbr.rel (0) target = $region13
    $region12: #{fcnn_forward_prepared.1} parent=1 // pred_region
      _
    $region13: #{fcnn_forward_prepared.1} parent=1 // pred_fallthru
      _
    // Predicated region
    $region14: #{fcnn_forward_prepared.1} parent=1 // pred_check
      _
    $region15: #{fcnn_forward_prepared.1} parent=1 // pred_check_branch
      %32 = sbr.rel (0) target = $region17
    $region16: #{fcnn_forward_prepared.1} parent=1 // pred_region
      %34 = vsyncadd [#allocation5], 0
      %s35 = sshll.u32 %s3, 4
      %s36 = int_to_ptr.hbm [resolvable:$true] %s35
      %s37 = sshll.u32 [#allocation4], 4
      %s38 = int_to_ptr.vmem [resolvable:$true] %s37
      %43 = dma.hbm_to_vmem [thread:$0]  %s36, 2048, %s38, [#allocation5], 128, 128, 8
    $region17: #{fcnn_forward_prepared.1} parent=1 // pred_fallthru
      _
    // Predicated region
    $region18: #{fcnn_forward_prepared.1} parent=1 // pred_check
      _
    $region19: #{fcnn_forward_prepared.1} parent=1 // pred_check_branch
      %45 = sbr.rel (0) target = $region21
    $region20: #{fcnn_forward_prepared.1} parent=1 // pred_region
      _
    $region21: #{fcnn_forward_prepared.1} parent=1 // pred_fallthru
      _
    // Predicated region
    $region22: #{fcnn_forward_prepared.1} parent=1 // pred_check
      _
    $region23: #{fcnn_forward_prepared.1} parent=1 // pred_check_branch
      %47 = sbr.rel (0) target = $region25
    $region24: #{fcnn_forward_prepared.1} parent=1 // pred_region
      %49 = vsyncadd [#allocation5], 0
      %s50 = sshll.u32 %s5, 4
      %s51 = int_to_ptr.hbm [resolvable:$true] %s50
      %s52 = sshll.u32 [#allocation6], 4
      %s53 = int_to_ptr.vmem [resolvable:$true] %s52
      %58 = dma.hbm_to_vmem [thread:$0]  %s51, 2048, %s53, [#allocation5], 128, 128, 8
    $region25: #{fcnn_forward_prepared.1} parent=1 // pred_fallthru
      _
    // Predicated region
    $region26: #{fcnn_forward_prepared.1} parent=1 // pred_check
      _
    $region27: #{fcnn_forward_prepared.1} parent=1 // pred_check_branch
      %60 = sbr.rel (0) target = $region29
    $region28: #{fcnn_forward_prepared.1} parent=1 // pred_region
      _
    $region29: #{fcnn_forward_prepared.1} parent=1 // pred_fallthru
      _
    // Predicated region
    $region30: #{fcnn_forward_prepared.1} parent=1 // pred_check
      _
    $region31: #{fcnn_forward_prepared.1} parent=1 // pred_check_branch
      %62 = sbr.rel (0) target = $region33
    $region32: #{fcnn_forward_prepared.1} parent=1 // pred_region
      %64 = dma.done [#allocation3], 2048
    $region33: #{fcnn_forward_prepared.1} parent=1 // pred_fallthru
      _
    // Predicated region
    $region34: #{fcnn_forward_prepared.1} parent=1 // pred_check
      _
    $region35: #{fcnn_forward_prepared.1} parent=1 // pred_check_branch
      %66 = sbr.rel (0) target = $region37
    $region36: #{fcnn_forward_prepared.1} parent=1 // pred_region
      %68 = dma.done [#allocation5], 2048
    $region37: #{fcnn_forward_prepared.1} parent=1 // pred_fallthru
      _
    // Predicated region
    $region38: #{fcnn_forward_prepared.1} parent=1 // pred_check
      _
    $region39: #{fcnn_forward_prepared.1} parent=1 // pred_check_branch
      %70 = sbr.rel (0) target = $region41
    $region40: #{fcnn_forward_prepared.1} parent=1 // pred_region
      %72 = dma.done [#allocation5], 2048
    $region41: #{fcnn_forward_prepared.1} parent=1 // pred_fallthru
      _
    %v73 = vld [vmem:[%s0] sm:$0xff]
    %v74 = vld [vmem:[#allocation2] sm:$0xff]
    %v75 = vld [vmem:[#allocation2 + $0x8] sm:$0xff]
    %v76 = vld [vmem:[#allocation2 + $0x10] sm:$0xff]
    %v77 = vld [vmem:[#allocation2 + $0x18] sm:$0xff]
    %v78 = vld [vmem:[#allocation2 + $0x20] sm:$0xff]
    %v79 = vld [vmem:[#allocation2 + $0x28] sm:$0xff]
    %v80 = vld [vmem:[#allocation2 + $0x30] sm:$0xff]
    %v81 = vld [vmem:[#allocation2 + $0x38] sm:$0xff]
    %v82 = vld [vmem:[#allocation2 + $0x40] sm:$0xff]
    %v83 = vld [vmem:[#allocation2 + $0x48] sm:$0xff]
    %v84 = vld [vmem:[#allocation2 + $0x50] sm:$0xff]
    %v85 = vld [vmem:[#allocation2 + $0x58] sm:$0xff]
    %v86 = vld [vmem:[#allocation2 + $0x60] sm:$0xff]
    %v87 = vld [vmem:[#allocation2 + $0x68] sm:$0xff]
    %v88 = vld [vmem:[#allocation2 + $0x70] sm:$0xff]
    %v89 = vld [vmem:[#allocation2 + $0x78] sm:$0xff]
    %v90 = vld [vmem:[%s2] sm:$0x1]
    %v92 = vperm.slane %v90, 0
    %94 = vmatpush.msra.mxu0 %v89
    %95 = vmatpush.msra.mxu0 %v88
    %96 = vmatpush.msra.mxu0 %v87
    %97 = vmatpush.msra.mxu0 %v86
    %98 = vmatpush.msra.mxu0 %v85
    %99 = vmatpush.msra.mxu0 %v84
    %100 = vmatpush.msra.mxu0 %v83
    %101 = vmatpush.msra.mxu0 %v82
    %102 = vmatpush.msra.mxu0 %v81
    %103 = vmatpush.msra.mxu0 %v80
    %104 = vmatpush.msra.mxu0 %v79
    %105 = vmatpush.msra.mxu0 %v78
    %106 = vmatpush.msra.mxu0 %v77
    %107 = vmatpush.msra.mxu0 %v76
    %108 = vmatpush.msra.mxu0 %v75
    %109 = vmatpush.msra.mxu0 %v74
    %110 = vmatmul.f32.gmra.mxu0 %v73
    %v111 = vpop.f32.mrf.mxu0
    %v112 = vadd.f32 %v92, %v111
    %113 = vdwg.mxu0
    %v114 = vtanh.pop %v112
    %v115 = vld [vmem:[#allocation4] sm:$0xff]
    %v116 = vld [vmem:[#allocation4 + $0x8] sm:$0xff]
    %v117 = vld [vmem:[#allocation4 + $0x10] sm:$0xff]
    %v118 = vld [vmem:[#allocation4 + $0x18] sm:$0xff]
    %v119 = vld [vmem:[#allocation4 + $0x20] sm:$0xff]
    %v120 = vld [vmem:[#allocation4 + $0x28] sm:$0xff]
    %v121 = vld [vmem:[#allocation4 + $0x30] sm:$0xff]
    %v122 = vld [vmem:[#allocation4 + $0x38] sm:$0xff]
    %v123 = vld [vmem:[#allocation4 + $0x40] sm:$0xff]
    %v124 = vld [vmem:[#allocation4 + $0x48] sm:$0xff]
    %v125 = vld [vmem:[#allocation4 + $0x50] sm:$0xff]
    %v126 = vld [vmem:[#allocation4 + $0x58] sm:$0xff]
    %v127 = vld [vmem:[#allocation4 + $0x60] sm:$0xff]
    %v128 = vld [vmem:[#allocation4 + $0x68] sm:$0xff]
    %v129 = vld [vmem:[#allocation4 + $0x70] sm:$0xff]
    %v130 = vld [vmem:[#allocation4 + $0x78] sm:$0xff]
    %v131 = vld [vmem:[%s4] sm:$0x1]
    %v133 = vperm.slane %v131, 0
    %135 = vmatpush.msra.mxu0 %v130
    %136 = vmatpush.msra.mxu0 %v129
    %137 = vmatpush.msra.mxu0 %v128
    %138 = vmatpush.msra.mxu0 %v127
    %139 = vmatpush.msra.mxu0 %v126
    %140 = vmatpush.msra.mxu0 %v125
    %141 = vmatpush.msra.mxu0 %v124
    %142 = vmatpush.msra.mxu0 %v123
    %143 = vmatpush.msra.mxu0 %v122
    %144 = vmatpush.msra.mxu0 %v121
    %145 = vmatpush.msra.mxu0 %v120
    %146 = vmatpush.msra.mxu0 %v119
    %147 = vmatpush.msra.mxu0 %v118
    %148 = vmatpush.msra.mxu0 %v117
    %149 = vmatpush.msra.mxu0 %v116
    %150 = vmatpush.msra.mxu0 %v115
    %151 = vmatmul.f32.gmra.mxu0 %v114
    %v152 = vpop.f32.mrf.mxu0
    %v153 = vadd.f32 %v133, %v152
    %154 = vdwg.mxu0
    %v155 = vtanh.pop %v153
    %v156 = vld [vmem:[#allocation6] sm:$0xff]
    %v157 = vld [vmem:[#allocation6 + $0x8] sm:$0xff]
    %v158 = vld [vmem:[#allocation6 + $0x10] sm:$0xff]
    %v159 = vld [vmem:[#allocation6 + $0x18] sm:$0xff]
    %v160 = vld [vmem:[#allocation6 + $0x20] sm:$0xff]
    %v161 = vld [vmem:[#allocation6 + $0x28] sm:$0xff]
    %v162 = vld [vmem:[#allocation6 + $0x30] sm:$0xff]
    %v163 = vld [vmem:[#allocation6 + $0x38] sm:$0xff]
    %v164 = vld [vmem:[#allocation6 + $0x40] sm:$0xff]
    %v165 = vld [vmem:[#allocation6 + $0x48] sm:$0xff]
    %v166 = vld [vmem:[#allocation6 + $0x50] sm:$0xff]
    %v167 = vld [vmem:[#allocation6 + $0x58] sm:$0xff]
    %v168 = vld [vmem:[#allocation6 + $0x60] sm:$0xff]
    %v169 = vld [vmem:[#allocation6 + $0x68] sm:$0xff]
    %v170 = vld [vmem:[#allocation6 + $0x70] sm:$0xff]
    %v171 = vld [vmem:[#allocation6 + $0x78] sm:$0xff]
    %v172 = vld [vmem:[%s6] sm:$0x1]
    %v174 = vperm.slane %v172, 0
    %176 = vmatpush.msra.mxu0 %v171
    %177 = vmatpush.msra.mxu0 %v170
    %178 = vmatpush.msra.mxu0 %v169
    %179 = vmatpush.msra.mxu0 %v168
    %180 = vmatpush.msra.mxu0 %v167
    %181 = vmatpush.msra.mxu0 %v166
    %182 = vmatpush.msra.mxu0 %v165
    %183 = vmatpush.msra.mxu0 %v164
    %184 = vmatpush.msra.mxu0 %v163
    %185 = vmatpush.msra.mxu0 %v162
    %186 = vmatpush.msra.mxu0 %v161
    %187 = vmatpush.msra.mxu0 %v160
    %188 = vmatpush.msra.mxu0 %v159
    %189 = vmatpush.msra.mxu0 %v158
    %190 = vmatpush.msra.mxu0 %v157
    %191 = vmatpush.msra.mxu0 %v156
    %192 = vmatmul.f32.gmra.mxu0 %v155
    %v193 = vpop.f32.mrf.mxu0
    %v194 = vadd.f32 %v174, %v193
    %195 = vdwg.mxu0
    %196 = vst [vmem:[%s7] sm:$0xff] %v194
    // Predicated region
    $region42: #{fcnn_forward_prepared.1} parent=1 // pred_check
      _
    $region43: #{fcnn_forward_prepared.1} parent=1 // pred_check_branch
      %198 = sbr.rel (0) target = $region45
    $region44: #{fcnn_forward_prepared.1} parent=1 // pred_region
      _
    $region45: #{fcnn_forward_prepared.1} parent=1 // pred_fallthru
      _
    // Predicated region
    $region46: #{fcnn_forward_prepared.1} parent=1 // pred_check
      _
    $region47: #{fcnn_forward_prepared.1} parent=1 // pred_check_branch
      %200 = sbr.rel (0) target = $region49
    $region48: #{fcnn_forward_prepared.1} parent=1 // pred_region
      _
    $region49: #{fcnn_forward_prepared.1} parent=1 // pred_fallthru
      _
    %201 = vsyncpa [#allocation3], 1
    %202 = vsyncpa [#allocation5], 1

</llo_original>
